<compile_context>
chip_gen: v7x
topology: tpu7x:2x2x1
jax: 0.10.0
libtpu: 0.0.40
codegen_flags: <defaults>
</compile_context>

<pallas_src>
import functools

import jax
import jax.numpy as jnp
from jax import lax
from jax.experimental import pallas as pl
from jax.experimental.pallas import tpu as pltpu


def _readout_kernel(init_ref, final_ref, w_ref, b_ref, out_ref, *,
                    num_classes, dim):
    w = w_ref[...]                                   # [2C, 2D]  (resident)

    # z = (cat([init, final]) @ W_block).T + b, computed directly as [2C, tile]
    # via last-dim/last-dim contractions (q @ k.T pattern: no big transpose,
    # the transposed latch happens on the MXU weight path).
    contract_last = (((1,), (1,)), ((), ()))
    z = (
        lax.dot_general(w[:, :dim], init_ref[...], contract_last,
                        preferred_element_type=jnp.float32)
        + lax.dot_general(w[:, dim:], final_ref[...], contract_last,
                          preferred_element_type=jnp.float32)
        + b_ref[...]                                 # [2C, 1] broadcast over lanes
    )                                                # [2C, tile]

    gate = jax.nn.sigmoid(z[:num_classes, :])        # [C, tile]
    transform = z[num_classes:, :]                   # [C, tile]
    out_ref[...] = (gate * transform).astype(out_ref.dtype)


def fuse_readout_params(w_gate, b_gate, w_transform, b_transform):
    """Build the fused, transposed parameter block ONCE (hoist out of the
    per-call path).

    Args:
      w_gate:      [2D, C]  (== regression_gate.weight.T)
      b_gate:      [C]
      w_transform: [D, C]   (== regression_transform.weight.T)
      b_transform: [C]
    Returns:
      w_t:   [2C, 2D]  rows 0:C gate head, rows C:2C transform head;
                       cols 0:D act on init, cols D:2D act on final.
      b_col: [2C, 1]
    """
    d2, c = w_gate.shape
    d = d2 // 2
    assert w_transform.shape == (d, c)

    # [[Wg1, 0], [Wg2, Wt]] in [2D, 2C], then transpose -> [2C, 2D].
    zeros = jnp.zeros((d, c), dtype=jnp.float32)
    w_block = jnp.concatenate(
        [jnp.concatenate([w_gate[:d].astype(jnp.float32), zeros], axis=1),
         jnp.concatenate([w_gate[d:].astype(jnp.float32),
                          w_transform.astype(jnp.float32)], axis=1)],
        axis=0)                                           # [2D, 2C]
    w_t = w_block.T                                       # [2C, 2D]
    b_col = jnp.concatenate(
        [b_gate.astype(jnp.float32), b_transform.astype(jnp.float32)]
    ).reshape(2 * c, 1)                                   # [2C, 1]
    return w_t, b_col


def readout_forward(initial_node_states, final_node_states, w_t, b_col,
                    *, node_tile=8192):
    """Pallas implementation of Readout.forward.

    Args:
      initial_node_states: [N, D]
      final_node_states:   [N, D]   (bf16 inputs also fine; accumulation is f32)
      w_t:   [2C, 2D] fused weight from fuse_readout_params
      b_col: [2C, 1]  fused bias   from fuse_readout_params
    Returns:
      [N, C] float32
    """
    n, d = initial_node_states.shape
    c2, d2 = w_t.shape
    c = c2 // 2
    assert d2 == 2 * d
    assert final_node_states.shape == (n, d)
    assert b_col.shape == (c2, 1)

    # Big tiles for a memory-bound kernel; tile % 128 == 0 whenever the grid
    # has more than one step (lane-dense [C, tile] output block).  The last
    # (ragged) block is handled by Pallas: padded reads, masked writes.
    if n <= node_tile:
        tile = n                       # single-step grid; block == full array
    else:
        tile = max(128, (node_tile // 128) * 128)
    grid = (pl.cdiv(n, tile),)

    kernel = functools.partial(_readout_kernel, num_classes=c, dim=d)

    out_t = pl.pallas_call(
        kernel,
        out_shape=jax.ShapeDtypeStruct((c, n), jnp.float32),
        grid_spec=pltpu.PrefetchScalarGridSpec(
            num_scalar_prefetch=0,
            grid=grid,
            in_specs=[
                pl.BlockSpec((tile, d), lambda i: (i, 0)),        # init tile
                pl.BlockSpec((tile, d), lambda i: (i, 0)),        # final tile
                pl.BlockSpec((2 * c, 2 * d), lambda i: (0, 0)),   # fused W (resident)
                pl.BlockSpec((2 * c, 1), lambda i: (0, 0)),       # fused bias (resident)
            ],
            out_specs=pl.BlockSpec((c, tile), lambda i: (0, i)),  # lane-dense [C, N]
        ),
        compiler_params=pltpu.CompilerParams(
            dimension_semantics=("parallel",)),
    )(initial_node_states, final_node_states, w_t, b_col)

    # Back to the module's [N, C] layout (tiny transpose; fuse into the
    # consumer if this matters).
    return out_t.T


def readout_reference(init, final, w_gate, b_gate, w_t, b_t):
    gate_in = jnp.concatenate([init, final], axis=-1)
    gate = jax.nn.sigmoid(gate_in @ w_gate + b_gate)
    return gate * (final @ w_t + b_t)


if __name__ == "__main__":
    # Module-consistent shapes:
    #   hidden_size = 30, selector_embedding_dimensionality = 2 -> D = 32
    #   num_classes = 2
    hidden_size = 30
    sel_dim = 2
    dimensionality = hidden_size + sel_dim          # D = 32
    num_classes = 2

    key = jax.random.PRNGKey(0)
    k_init, k_final, k_wg, k_bg, k_wt, k_bt = jax.random.split(key, 6)

    lim_g = 1.0 / jnp.sqrt(2.0 * dimensionality)
    lim_t = 1.0 / jnp.sqrt(1.0 * dimensionality)
    w_gate = jax.random.uniform(
        k_wg, (2 * dimensionality, num_classes), jnp.float32, -lim_g, lim_g)
    b_gate = jax.random.uniform(
        k_bg, (num_classes,), jnp.float32, -lim_g, lim_g)
    w_transform = jax.random.uniform(
        k_wt, (dimensionality, num_classes), jnp.float32, -lim_t, lim_t)
    b_transform = jax.random.uniform(
        k_bt, (num_classes,), jnp.float32, -lim_t, lim_t)

    # Fused params built once (parameter-load time), not per forward call.
    w_fused, b_fused = fuse_readout_params(w_gate, b_gate, w_transform,
                                           b_transform)
    w_fused = jax.block_until_ready(w_fused)
    b_fused = jax.block_until_ready(b_fused)

    fwd = jax.jit(readout_forward, static_argnames=("node_tile",))

    # Test 1: small graph (single-step grid, block == full array).
    n1 = 64
    init1 = jax.random.normal(k_init, (n1, dimensionality), dtype=jnp.float32)
    final1 = jax.random.normal(k_final, (n1, dimensionality), dtype=jnp.float32)
    out1 = jax.block_until_ready(fwd(init1, final1, w_fused, b_fused))
    ref1 = readout_reference(init1, final1, w_gate, b_gate, w_transform,
                             b_transform)
    assert out1.shape == (n1, num_classes)
    assert jnp.allclose(out1, ref1, atol=1e-5, rtol=1e-5)

    # Test 2: non-multiple node count + multi-step grid with a small tile
    # (exercises the ragged last block and the "parallel" grid axis).
    n2 = 300
    k_i2, k_f2 = jax.random.split(jax.random.PRNGKey(1))
    init2 = jax.random.normal(k_i2, (n2, dimensionality), dtype=jnp.float32)
    final2 = jax.random.normal(k_f2, (n2, dimensionality), dtype=jnp.float32)
    out2 = jax.block_until_ready(
        fwd(init2, final2, w_fused, b_fused, node_tile=128))
    ref2 = readout_reference(init2, final2, w_gate, b_gate, w_transform,
                             b_transform)
    assert out2.shape == (n2, num_classes)
    assert jnp.allclose(out2, ref2, atol=1e-5, rtol=1e-5)

    # Test 3: default big tile (8192) with a ragged last block and >1 grid step.
    n3 = 8200
    k_i3, k_f3 = jax.random.split(jax.random.PRNGKey(2))
    init3 = jax.random.normal(k_i3, (n3, dimensionality), dtype=jnp.float32)
    final3 = jax.random.normal(k_f3, (n3, dimensionality), dtype=jnp.float32)
    out3 = jax.block_until_ready(fwd(init3, final3, w_fused, b_fused))
    ref3 = readout_reference(init3, final3, w_gate, b_gate, w_transform,
                             b_transform)
    assert out3.shape == (n3, num_classes)
    assert jnp.allclose(out3, ref3, atol=1e-5, rtol=1e-5)

    print("KERNEL_OK")
</pallas_src>

<mosaic_0001>
module attributes {stable_mosaic.version = 11 : i64} {
  func.func @_readout_kernel(%arg0: i32, %arg1: memref<64x32xf32, #tpu.memory_space<vmem>>, %arg2: memref<64x32xf32, #tpu.memory_space<vmem>>, %arg3: memref<4x64xf32, #tpu.memory_space<vmem>>, %arg4: memref<4x1xf32, #tpu.memory_space<vmem>>, %arg5: memref<2x64xf32, #tpu.memory_space<vmem>>) attributes {dimension_semantics = [#tpu.dimension_semantics<parallel>], iteration_bounds = array<i64: 1>, scalar_prefetch = 0 : i64, scratch_operands = 0 : i64, tpu.core_type = #tpu.core_type<tc>, window_params = [{transform_indices = @transform_0, window_bounds = array<i64: 64, 32>}, {transform_indices = @transform_1, window_bounds = array<i64: 64, 32>}, {pipeline_mode = #tpu.pipeline_mode<synchronous>, transform_indices = @transform_2, window_bounds = array<i64: 4, 64>}, {pipeline_mode = #tpu.pipeline_mode<synchronous>, transform_indices = @transform_3, window_bounds = array<i64: 4, 1>}, {transform_indices = @transform_4, window_bounds = array<i64: 2, 64>}]} {
    %c0 = arith.constant 0 : index
    %c0_0 = arith.constant 0 : index
    %0 = vector.load %arg3[%c0, %c0_0] : memref<4x64xf32, #tpu.memory_space<vmem>>, vector<4x64xf32>
    %1 = vector.extract_strided_slice %0 {offsets = [0, 0], sizes = [4, 32], strides = [1, 1]} : vector<4x64xf32> to vector<4x32xf32>
    %c0_1 = arith.constant 0 : index
    %c0_2 = arith.constant 0 : index
    %2 = vector.load %arg1[%c0_1, %c0_2] : memref<64x32xf32, #tpu.memory_space<vmem>>, vector<64x32xf32>
    %cst = arith.constant dense<0.000000e+00> : vector<4x64xf32>
    %3 = tpu.matmul %1, %2, %cst {dimension_numbers = #tpu.dot_dimension_numbers<[1], [1], [0], [0], [0, 0, 1, 0], [], []>} : vector<4x32xf32>, vector<64x32xf32>, vector<4x64xf32> -> vector<4x64xf32>
    %4 = vector.extract_strided_slice %0 {offsets = [0, 32], sizes = [4, 32], strides = [1, 1]} : vector<4x64xf32> to vector<4x32xf32>
    %c0_3 = arith.constant 0 : index
    %c0_4 = arith.constant 0 : index
    %5 = vector.load %arg2[%c0_3, %c0_4] : memref<64x32xf32, #tpu.memory_space<vmem>>, vector<64x32xf32>
    %cst_5 = arith.constant dense<0.000000e+00> : vector<4x64xf32>
    %6 = tpu.matmul %4, %5, %cst_5 {dimension_numbers = #tpu.dot_dimension_numbers<[1], [1], [0], [0], [0, 0, 1, 0], [], []>} : vector<4x32xf32>, vector<64x32xf32>, vector<4x64xf32> -> vector<4x64xf32>
    %7 = arith.addf %3, %6 : vector<4x64xf32>
    %c0_6 = arith.constant 0 : index
    %c0_7 = arith.constant 0 : index
    %8 = vector.load %arg4[%c0_6, %c0_7] : memref<4x1xf32, #tpu.memory_space<vmem>>, vector<4x1xf32>
    %9 = vector.broadcast %8 : vector<4x1xf32> to vector<4x64xf32>
    %10 = arith.addf %7, %9 : vector<4x64xf32>
    %11 = vector.extract_strided_slice %10 {offsets = [0, 0], sizes = [2, 64], strides = [1, 1]} : vector<4x64xf32> to vector<2x64xf32>
    %12 = arith.negf %11 : vector<2x64xf32>
    %13 = math.exp %12 : vector<2x64xf32>
    %cst_8 = arith.constant 1.000000e+00 : f32
    %14 = vector.broadcast %cst_8 : f32 to vector<2x64xf32>
    %15 = arith.addf %14, %13 : vector<2x64xf32>
    %16 = arith.divf %14, %15 : vector<2x64xf32>
    %17 = vector.extract_strided_slice %10 {offsets = [2, 0], sizes = [2, 64], strides = [1, 1]} : vector<4x64xf32> to vector<2x64xf32>
    %18 = arith.mulf %16, %17 : vector<2x64xf32>
    %c0_9 = arith.constant 0 : index
    %c0_10 = arith.constant 0 : index
    %19 = vector.load %arg5[%c0_9, %c0_10] : memref<2x64xf32, #tpu.memory_space<vmem>>, vector<2x64xf32>
    tpu.vector_store %arg5[%c0_9, %c0_10], %18 {strides = array<i32>} : memref<2x64xf32, #tpu.memory_space<vmem>>, vector<2x64xf32>,
    return
  }
  func.func @transform_0(%arg0: i32) -> (i32, i32) {
    %c0_i32 = arith.constant 0 : i32
    %c0_i32_0 = arith.constant 0 : i32
    return %arg0, %c0_i32 : i32, i32
  }
  func.func @transform_1(%arg0: i32) -> (i32, i32) {
    %c0_i32 = arith.constant 0 : i32
    %c0_i32_0 = arith.constant 0 : i32
    return %arg0, %c0_i32 : i32, i32
  }
  func.func @transform_2(%arg0: i32) -> (i32, i32) {
    %c0_i32 = arith.constant 0 : i32
    %c0_i32_0 = arith.constant 0 : i32
    %c0_i32_1 = arith.constant 0 : i32
    return %c0_i32, %c0_i32_0 : i32, i32
  }
  func.func @transform_3(%arg0: i32) -> (i32, i32) {
    %c0_i32 = arith.constant 0 : i32
    %c0_i32_0 = arith.constant 0 : i32
    %c0_i32_1 = arith.constant 0 : i32
    return %c0_i32, %c0_i32_0 : i32, i32
  }
  func.func @transform_4(%arg0: i32) -> (i32, i32) {
    %c0_i32 = arith.constant 0 : i32
    %c0_i32_0 = arith.constant 0 : i32
    return %c0_i32, %arg0 : i32, i32
  }
}

</mosaic_0001>

<llo_original>
// kernel: readout_forward.1
$region0: #{readout_forward.1}
  #allocation0 [shape = 'u32[]', space=smem, size = 0x4, offset = 0x4, fixed_abs, tag = 'smem constant byte address 0x4 - core index']
  #allocation1 [shape = 'u32[144,128]{1,0:T(1,128)}', space=vmem, size = 0x12000, scoped, tag = 'internal scratch']
  %s0 = inlined_call_operand.vmem [shape: f32[64,32], index: 0, kind: input, shape index: {}]
  %s1 = inlined_call_operand.vmem [shape: f32[64,32], index: 1, kind: input, shape index: {}]
  %s2 = inlined_call_operand.vmem [shape: f32[4,64], index: 2, kind: input, shape index: {}]
  %s3 = inlined_call_operand.vmem [shape: f32[4,1], index: 3, kind: input, shape index: {}]
  %s4 = inlined_call_operand.hbm [shape: f32[2,64], index: 4, kind: output, shape index: {}]
  %s5 = sld [smem:[#allocation0]]
  $region26: #{readout_forward.1} parent=0
    _
  %s7 = ssub.s32 1, %s5
  %s8 = scalar_select 0, %s7, %s5
  $region1: #{readout_forward.1} parent=0
    #allocation2 [shape = 'u8[1024]{0}', space=vmem, size = 0x400, scoped, tag = 'output window, operand 0, single buffered']
    #allocation3 [shape = 's32[1]{0}', space=sflag, size = 0x4, scoped, tag = 'scoped memory for readout_forward.1']
    %9 = vsyncpa [#allocation3], 0
    // Predicated region
    $region2: #{readout_forward.1} parent=1 // pred_check
      _
    $region3: #{readout_forward.1} parent=1 // pred_check_branch
      %11 = sbr.rel (0) target = $region5
    $region4: #{readout_forward.1} parent=1 // pred_region
      _
    $region5: #{readout_forward.1} parent=1 // pred_fallthru
      _
    // Predicated region
    $region6: #{readout_forward.1} parent=1 // pred_check
      _
    $region7: #{readout_forward.1} parent=1 // pred_check_branch
      %13 = sbr.rel (0) target = $region9
    $region8: #{readout_forward.1} parent=1 // pred_region
      _
    $region9: #{readout_forward.1} parent=1 // pred_fallthru
      _
    // Predicated region
    $region10: #{readout_forward.1} parent=1 // pred_check
      _
    $region11: #{readout_forward.1} parent=1 // pred_check_branch
      %15 = sbr.rel (0) target = $region13
    $region12: #{readout_forward.1} parent=1 // pred_region
      _
    $region13: #{readout_forward.1} parent=1 // pred_fallthru
      _
    // Predicated region
    $region14: #{readout_forward.1} parent=1 // pred_check
      _
    $region15: #{readout_forward.1} parent=1 // pred_check_branch
      %17 = sbr.rel (0) target = $region17
    $region16: #{readout_forward.1} parent=1 // pred_region
      _
    $region17: #{readout_forward.1} parent=1 // pred_fallthru
      _
    %v18 = vld [vmem:[%s2] sm:$0xf]
    %v19 = vld [vmem:[%s0] sm:$0xff]
    %v20 = vld [vmem:[%s0 + $0x8] sm:$0xff]
    %v21 = vld [vmem:[%s0 + $0x10] sm:$0xff]
    %v22 = vld [vmem:[%s0 + $0x18] sm:$0xff]
    %v23 = vld [vmem:[%s0 + $0x20] sm:$0xff]
    %v24 = vld [vmem:[%s0 + $0x28] sm:$0xff]
    %v25 = vld [vmem:[%s0 + $0x30] sm:$0xff]
    %v26 = vld [vmem:[%s0 + $0x38] sm:$0xff]
    %v27 = vld [vmem:[%s1] sm:$0xff]
    %v28 = vld [vmem:[%s1 + $0x8] sm:$0xff]
    %v29 = vld [vmem:[%s1 + $0x10] sm:$0xff]
    %v30 = vld [vmem:[%s1 + $0x18] sm:$0xff]
    %v31 = vld [vmem:[%s1 + $0x20] sm:$0xff]
    %v32 = vld [vmem:[%s1 + $0x28] sm:$0xff]
    %v33 = vld [vmem:[%s1 + $0x30] sm:$0xff]
    %v34 = vld [vmem:[%s1 + $0x38] sm:$0xff]
    %36 = vrot.lane.b32.xlu0 %v18, 96
    %v37 = vpop.permute.xlu0 %36
    %vm38 = vcmask 261120
    %v39 = vsel %vm38, %v37, 0
    %v42 = vsel %vm38, %v27, 0
    %v45 = vsel %vm38, %v28, 0
    %v48 = vsel %vm38, %v29, 0
    %v51 = vsel %vm38, %v30, 0
    %v54 = vsel %vm38, %v31, 0
    %v57 = vsel %vm38, %v32, 0
    %v60 = vsel %vm38, %v33, 0
    %v63 = vsel %vm38, %v34, 0
    %65 = vmatprep.subr.mxu0 0.0
    %66 = vmatpush1.xpose.msra.mxu0 %v42
    %67 = vmatprep.subr.mxu0 0.0
    %68 = vmatpush1.xpose.msra.mxu0 %v45
    %69 = vmatprep.subr.mxu0 0.0
    %70 = vmatpush1.xpose.msra.mxu0 %v48
    %71 = vmatprep.subr.mxu0 0.0
    %72 = vmatpush1.xpose.msra.mxu0 %v51
    %73 = vmatprep.subr.mxu0 0.0
    %74 = vmatpush1.xpose.msra.mxu0 %v54
    %75 = vmatprep.subr.mxu0 0.0
    %76 = vmatpush1.xpose.msra.mxu0 %v57
    %77 = vmatprep.subr.mxu0 0.0
    %78 = vmatpush1.xpose.msra.mxu0 %v60
    %79 = vmatprep.subr.mxu0 0.0
    %80 = vmatpush1.xpose.msra.mxu0 %v63
    %81 = vmatprep.subr.mxu0 0.0
    %82 = vmatpush1.xpose.msra.mxu0 0.0
    %83 = vmatprep.subr.mxu0 0.0
    %84 = vmatpush1.xpose.msra.mxu0 0.0
    %85 = vmatprep.subr.mxu0 0.0
    %86 = vmatpush1.xpose.msra.mxu0 0.0
    %87 = vmatprep.subr.mxu0 0.0
    %88 = vmatpush1.xpose.msra.mxu0 0.0
    %89 = vmatprep.subr.mxu0 0.0
    %90 = vmatpush1.xpose.msra.mxu0 0.0
    %91 = vmatprep.subr.mxu0 0.0
    %92 = vmatpush1.xpose.msra.mxu0 0.0
    %93 = vmatprep.subr.mxu0 0.0
    %94 = vmatpush1.xpose.msra.mxu0 0.0
    %95 = vmatprep.subr.mxu0 0.0
    %96 = vmatpush1.xpose.msra.mxu0 0.0
    %97 = vmatprep.subr.mxu0 0.0
    %98 = vmatpush1.xpose.msra.mxu0 0.0
    %99 = vmatprep.subr.mxu0 0.0
    %100 = vmatpush1.xpose.msra.mxu0 0.0
    %101 = vmatprep.subr.mxu0 0.0
    %102 = vmatpush1.xpose.msra.mxu0 0.0
    %103 = vmatprep.subr.mxu0 0.0
    %104 = vmatpush1.xpose.msra.mxu0 0.0
    %105 = vmatprep.subr.mxu0 0.0
    %106 = vmatpush1.xpose.msra.mxu0 0.0
    %107 = vmatprep.subr.mxu0 0.0
    %108 = vmatpush1.xpose.msra.mxu0 0.0
    %109 = vmatprep.subr.mxu0 0.0
    %110 = vmatpush1.xpose.msra.mxu0 0.0
    %111 = vmatprep.subr.mxu0 0.0
    %112 = vmatpush1.xpose.msra.mxu0 0.0
    %113 = vmatprep.subr.mxu0 0.0
    %114 = vmatpush1.xpose.msra.mxu0 0.0
    %115 = vmatprep.subr.mxu0 0.0
    %116 = vmatpush1.xpose.msra.mxu0 0.0
    %117 = vmatprep.subr.mxu0 0.0
    %118 = vmatpush1.xpose.msra.mxu0 0.0
    %119 = vmatprep.subr.mxu0 0.0
    %120 = vmatpush1.xpose.msra.mxu0 0.0
    %121 = vmatprep.subr.mxu0 0.0
    %122 = vmatpush1.xpose.msra.mxu0 0.0
    %123 = vmatprep.subr.mxu0 0.0
    %124 = vmatpush1.xpose.msra.mxu0 0.0
    %125 = vmatprep.subr.mxu0 0.0
    %126 = vmatpush1.xpose.msra.mxu0 0.0
    %127 = vmatprep.subr.mxu0 0.0
    %128 = vmatpush1.xpose.msra.mxu0 0.0
    %129 = vmatprep.mubr.f32.mxu0 0.0
    %130 = vmatmul.mubr.f32.gmra.mrb[0].mxu0 %v39
    %v131 = vpop.f32.mrb[0].mxu0
    %v132 = vadd.f32 0.0, %v131
    %v133 = vpop.f32.mrb[0].mxu0
    %134 = vdwg.mxu0
    %v135 = vsel %vm38, %v18, 0
    %v138 = vsel %vm38, %v19, 0
    %v141 = vsel %vm38, %v20, 0
    %v144 = vsel %vm38, %v21, 0
    %v147 = vsel %vm38, %v22, 0
    %v150 = vsel %vm38, %v23, 0
    %v153 = vsel %vm38, %v24, 0
    %v156 = vsel %vm38, %v25, 0
    %v159 = vsel %vm38, %v26, 0
    %161 = vmatprep.subr.mxu0 0.0
    %162 = vmatpush1.xpose.msra.mxu0 %v138
    %163 = vmatprep.subr.mxu0 0.0
    %164 = vmatpush1.xpose.msra.mxu0 %v141
    %165 = vmatprep.subr.mxu0 0.0
    %166 = vmatpush1.xpose.msra.mxu0 %v144
    %167 = vmatprep.subr.mxu0 0.0
    %168 = vmatpush1.xpose.msra.mxu0 %v147
    %169 = vmatprep.subr.mxu0 0.0
    %170 = vmatpush1.xpose.msra.mxu0 %v150
    %171 = vmatprep.subr.mxu0 0.0
    %172 = vmatpush1.xpose.msra.mxu0 %v153
    %173 = vmatprep.subr.mxu0 0.0
    %174 = vmatpush1.xpose.msra.mxu0 %v156
    %175 = vmatprep.subr.mxu0 0.0
    %176 = vmatpush1.xpose.msra.mxu0 %v159
    %177 = vmatprep.subr.mxu0 0.0
    %178 = vmatpush1.xpose.msra.mxu0 0.0
    %179 = vmatprep.subr.mxu0 0.0
    %180 = vmatpush1.xpose.msra.mxu0 0.0
    %181 = vmatprep.subr.mxu0 0.0
    %182 = vmatpush1.xpose.msra.mxu0 0.0
    %183 = vmatprep.subr.mxu0 0.0
    %184 = vmatpush1.xpose.msra.mxu0 0.0
    %185 = vmatprep.subr.mxu0 0.0
    %186 = vmatpush1.xpose.msra.mxu0 0.0
    %187 = vmatprep.subr.mxu0 0.0
    %188 = vmatpush1.xpose.msra.mxu0 0.0
    %189 = vmatprep.subr.mxu0 0.0
    %190 = vmatpush1.xpose.msra.mxu0 0.0
    %191 = vmatprep.subr.mxu0 0.0
    %192 = vmatpush1.xpose.msra.mxu0 0.0
    %193 = vmatprep.subr.mxu0 0.0
    %194 = vmatpush1.xpose.msra.mxu0 0.0
    %195 = vmatprep.subr.mxu0 0.0
    %196 = vmatpush1.xpose.msra.mxu0 0.0
    %197 = vmatprep.subr.mxu0 0.0
    %198 = vmatpush1.xpose.msra.mxu0 0.0
    %199 = vmatprep.subr.mxu0 0.0
    %200 = vmatpush1.xpose.msra.mxu0 0.0
    %201 = vmatprep.subr.mxu0 0.0
    %202 = vmatpush1.xpose.msra.mxu0 0.0
    %203 = vmatprep.subr.mxu0 0.0
    %204 = vmatpush1.xpose.msra.mxu0 0.0
    %205 = vmatprep.subr.mxu0 0.0
    %206 = vmatpush1.xpose.msra.mxu0 0.0
    %207 = vmatprep.subr.mxu0 0.0
    %208 = vmatpush1.xpose.msra.mxu0 0.0
    %209 = vmatprep.subr.mxu0 0.0
    %210 = vmatpush1.xpose.msra.mxu0 0.0
    %211 = vmatprep.subr.mxu0 0.0
    %212 = vmatpush1.xpose.msra.mxu0 0.0
    %213 = vmatprep.subr.mxu0 0.0
    %214 = vmatpush1.xpose.msra.mxu0 0.0
    %215 = vmatprep.subr.mxu0 0.0
    %216 = vmatpush1.xpose.msra.mxu0 0.0
    %217 = vmatprep.subr.mxu0 0.0
    %218 = vmatpush1.xpose.msra.mxu0 0.0
    %219 = vmatprep.subr.mxu0 0.0
    %220 = vmatpush1.xpose.msra.mxu0 0.0
    %221 = vmatprep.subr.mxu0 0.0
    %222 = vmatpush1.xpose.msra.mxu0 0.0
    %223 = vmatprep.subr.mxu0 0.0
    %224 = vmatpush1.xpose.msra.mxu0 0.0
    %225 = vmatprep.mubr.f32.mxu0 0.0
    %226 = vmatmul.mubr.f32.gmra.mrb[0].mxu0 %v135
    %v227 = vpop.f32.mrb[0].mxu0
    %v228 = vadd.f32 %v132, %v227
    %v229 = vpop.f32.mrb[0].mxu0
    %230 = vdwg.mxu0
    %v231 = vld [vmem:[%s3] sm:$0xf]
    %233 = vset.pattern.permute.xlu0 0
    %234 = vperm.xlu0 %233, %v231
    %v235 = vpop.permute.xlu0 %234
    %v237 = vadd.f32 %v228, %v235
    %v238 = vxor.u32 %v237, 2147483648
    %v239 = vmul.f32 %v238, 1.442695
    %v240 = vpow.pop %v239
    %v241 = vadd.f32 %v240, 1.0
    %v242 = vrcp.pop %v241
    %v243 = vmul.f32 1.0, %v242
    %v245 = vrot.slane %v237, 2
    %v247 = vmul.f32 %v243, %v245
    %vm248 = vcmask 517120
    %249 = vst.msk [vmem:[#allocation2] sm:$0x3] %vm248, %v247
    // Predicated region
    $region18: #{readout_forward.1} parent=1 // pred_check
      _
    $region19: #{readout_forward.1} parent=1 // pred_check_branch
      %251 = sbr.rel (0) target = $region21
    $region20: #{readout_forward.1} parent=1 // pred_region
      %s253 = ssub.s32 32, 32
      %254 = vsyncadd [#allocation3], %s253
      %s256 = sshll.u32 [#allocation2], 4
      %s257 = int_to_ptr.vmem [resolvable:$true] %s256
      %259 = dma.vmem_to_hbm [thread:$0]  %s257, 32, %s4, [#allocation3]
    $region21: #{readout_forward.1} parent=1 // pred_fallthru
      _
    // Predicated region
    $region22: #{readout_forward.1} parent=1 // pred_check
      _
    $region23: #{readout_forward.1} parent=1 // pred_check_branch
      %261 = sbr.rel (0) target = $region25
    $region24: #{readout_forward.1} parent=1 // pred_region
      %262 = dma.done [#allocation3], 32
    $region25: #{readout_forward.1} parent=1 // pred_fallthru
      _
    %263 = vsyncpa [#allocation3], 1

</llo_original>
